<compile_context>
chip_gen: v5e
topology: v5e:2x2
jax: 0.10.0
libtpu: 0.0.40
codegen_flags: <defaults>
</compile_context>

<pallas_src>
import functools

import jax
import jax.numpy as jnp
from jax.experimental import pallas as pl
from jax.experimental.pallas import tpu as pltpu

_LANE = 128


def _round_up(a, b):
    return ((a + b - 1) // b) * b


def _sublane_align(dtype):
    # Sub-32-bit dtypes pack along sublanes: f32 -> 8, bf16 -> 16, int8/fp8 -> 32.
    return max(8, 32 // jnp.dtype(dtype).itemsize)


def _avgmax_pool_kernel(x_ref, o_ref, sum_ref, max_ref, *, inv_n, n_total, tn, mask_n):
    """Accumulate sum & max over the (last, 'arbitrary') spatial grid axis.

    x_ref   : (1, tc, tn) tile of the (B, C, N) input, native dtype
    o_ref   : (1, tc, 1)  output tile (written on the last reduction step)
    sum_ref : (1, tc, 1)  f32 running sum  (persists across grid axis 2)
    max_ref : (1, tc, 1)  f32 running max  (persists across grid axis 2)
    """
    n_idx = pl.program_id(2)

    @pl.when(n_idx == 0)
    def _init():
        sum_ref[...] = jnp.zeros_like(sum_ref)
        max_ref[...] = jnp.full_like(max_ref, -jnp.inf)

    # Upcast in-kernel: HBM traffic stays at native dtype width; accumulate in f32.
    x = x_ref[...].astype(jnp.float32)                              # (1, tc, tn)

    if mask_n:
        # Ragged spatial extent: the last lane block hangs past N. Mask OOB lanes
        # to 0 for the sum and -inf for the max (full-lane blocks mask to all-true).
        lane_ids = jax.lax.broadcasted_iota(jnp.int32, x.shape, dimension=2)
        valid = (n_idx * tn + lane_ids) < n_total
        x_sum = jnp.where(valid, x, 0.0)
        x_max = jnp.where(valid, x, -jnp.inf)
    else:
        x_sum = x
        x_max = x

    sum_ref[...] = sum_ref[...] + jnp.sum(x_sum, axis=-1, keepdims=True)
    max_ref[...] = jnp.maximum(max_ref[...], jnp.max(x_max, axis=-1, keepdims=True))

    @pl.when(n_idx == pl.num_programs(2) - 1)
    def _finalize():
        avg = sum_ref[...] * inv_n                                  # fold 1/N once
        o_ref[...] = (0.5 * (avg + max_ref[...])).astype(o_ref.dtype)


def adaptive_avgmax_pool2d(x, output_size=1, *, target_block_bytes=8 * 1024 * 1024):
    """Pallas TPU equivalent of 0.5*(adaptive_avg_pool2d + adaptive_max_pool2d).

    x: (B, C, H, W). Returns (B, C, 1, 1) in x.dtype.
    """
    if output_size not in (1, (1, 1)):
        # TODO(synk): general adaptive output_size (windowed pooling) not implemented.
        raise NotImplementedError("only global pooling (output_size=1) is supported")

    B, C, H, W = x.shape
    N = H * W
    xr = x.reshape(B, C, N)                  # row-major reshape: no HBM data movement

    itemsize = jnp.dtype(x.dtype).itemsize
    c_align = _sublane_align(x.dtype)
    budget = min(int(target_block_bytes), 16 * 1024 * 1024)   # hard cap per block

    # ---- channel (sublane) tile ----
    # Full channel extent is always a legal block dim; for big C use a 256 tile
    # (multiple of every dtype's sublane alignment) with a ragged last block.
    tc = C if C <= 256 else 256

    # ---- spatial (lane) tile: gets the budget first (contiguous DMA segments) ----
    def lane_tile(tc_now):
        if N <= _LANE:
            return N                                             # full extent (legal)
        tc_pad = _round_up(tc_now, c_align)                      # count VMEM padding
        cap = max(_LANE, (budget // (tc_pad * itemsize)) // _LANE * _LANE)
        return min((N // _LANE) * _LANE, cap)

    tn = lane_tile(tc)
    tn_goal = min(1024, N if N <= _LANE else (N // _LANE) * _LANE)
    while tn < tn_goal and C > 8 and tc > c_align:
        # Shrink channels (dtype-aligned multiples of 8) to lengthen the lane tile.
        tc = max(c_align, (tc // 2 // c_align) * c_align)
        tn = lane_tile(tc)

    # ---- guarantee >=2 'parallel' grid units so both v7x TensorCores get work ----
    if B == 1 and C > 8 and pl.cdiv(C, tc) == 1:
        split = _round_up(pl.cdiv(C, 2), c_align)
        if split >= C:
            split = _round_up(pl.cdiv(C, 2), 8)
        if split < C:
            tc = split

    mask_n = (N % tn) != 0
    grid = (B, pl.cdiv(C, tc), pl.cdiv(N, tn))

    # Scoped VMEM: 2x (double-buffered) padded input block + headroom for the tiny
    # output/scratch buffers and compiler-internal scratch. Clamped so it is safe on
    # v5e/v6e (128 MiB physical) and v7x (64 MiB physical).
    block_padded = _round_up(tc, c_align) * _round_up(tn, _LANE) * itemsize
    vmem_limit = int(min(48 * 2**20, max(32 * 2**20, 2 * block_padded + 8 * 2**20)))

    kernel = functools.partial(
        _avgmax_pool_kernel,
        inv_n=1.0 / float(N), n_total=N, tn=tn, mask_n=mask_n,
    )

    out = pl.pallas_call(
        kernel,
        out_shape=jax.ShapeDtypeStruct((B, C, 1), x.dtype),
        grid_spec=pltpu.PrefetchScalarGridSpec(
            num_scalar_prefetch=0,
            grid=grid,
            in_specs=[pl.BlockSpec((1, tc, tn), lambda b, c, n: (b, c, n))],
            out_specs=pl.BlockSpec((1, tc, 1), lambda b, c, n: (b, c, 0)),
            scratch_shapes=[
                pltpu.VMEM((1, tc, 1), jnp.float32),   # running sum
                pltpu.VMEM((1, tc, 1), jnp.float32),   # running max
            ],
        ),
        compiler_params=pltpu.CompilerParams(
            dimension_semantics=("parallel", "parallel", "arbitrary"),
            vmem_limit_bytes=vmem_limit,
        ),
    )(xr)

    return out.reshape(B, C, 1, 1)


def adaptive_avgmax_pool2d_reference(x):
    x_avg = jnp.mean(x, axis=(2, 3), keepdims=True)
    x_max = jnp.max(x, axis=(2, 3), keepdims=True)
    return 0.5 * (x_avg + x_max)


if __name__ == "__main__":
    key = jax.random.PRNGKey(0)

    # 1) Shape implied by the module spec.
    x1 = jax.random.normal(key, (2, 4, 16, 16), dtype=jnp.float32)
    ref1 = adaptive_avgmax_pool2d_reference(x1)
    out1 = jax.block_until_ready(adaptive_avgmax_pool2d(x1, output_size=1))
    assert out1.shape == (2, 4, 1, 1)
    assert jnp.allclose(out1, ref1, rtol=1e-5, atol=1e-6), "mismatch vs reference"

    # 2) Tiny block budget -> multiple reduction steps; exercises the pl.when
    #    init/accumulate/finalize accumulator path across the reduction grid axis.
    out2 = jax.block_until_ready(
        adaptive_avgmax_pool2d(x1, output_size=1, target_block_bytes=4096))
    assert jnp.allclose(out2, ref1, rtol=1e-5, atol=1e-6), "mismatch vs reference (tiled)"

    # 3) Ragged spatial extent (N = 169, not a multiple of 128) -> in-kernel lane
    #    masking; B=1 also exercises the 2-tile channel split (v7x dual-core path).
    x3 = jax.random.normal(jax.random.fold_in(key, 1), (1, 12, 13, 13), dtype=jnp.float32)
    ref3 = adaptive_avgmax_pool2d_reference(x3)
    out3 = jax.block_until_ready(
        adaptive_avgmax_pool2d(x3, output_size=1, target_block_bytes=4096))
    assert out3.shape == (1, 12, 1, 1)
    assert jnp.allclose(out3, ref3, rtol=1e-5, atol=1e-6), "mismatch vs reference (ragged)"

    print("KERNEL_OK")
</pallas_src>

<mosaic_0001>
module attributes {stable_mosaic.version = 11 : i64} {
  func.func @_avgmax_pool_kernel(%arg0: i32, %arg1: i32, %arg2: i32, %arg3: memref<1x4x256xf32, #tpu.memory_space<vmem>>, %arg4: memref<1x4x1xf32, #tpu.memory_space<vmem>>, %arg5: memref<1x4x1xf32, #tpu.memory_space<vmem>>, %arg6: memref<1x4x1xf32, #tpu.memory_space<vmem>>) attributes {dimension_semantics = [#tpu.dimension_semantics<parallel>, #tpu.dimension_semantics<parallel>, #tpu.dimension_semantics<arbitrary>], iteration_bounds = array<i64: 2, 1, 1>, scalar_prefetch = 0 : i64, scratch_operands = 2 : i64, tpu.core_type = #tpu.core_type<tc>, window_params = [{transform_indices = @transform_0, window_bounds = array<i64: 1, 4, 256>}, {transform_indices = @transform_1, window_bounds = array<i64: 1, 4, 1>}]} {
    %c0_i32 = arith.constant 0 : i32
    %0 = arith.cmpi eq, %arg2, %c0_i32 : i32
    %1 = arith.extui %0 : i1 to i32
    %c0_i32_0 = arith.constant 0 : i32
    %2 = arith.cmpi ne, %1, %c0_i32_0 : i32
    scf.if %2 {
      %cst_18 = arith.constant 0.000000e+00 : f32
      %17 = vector.broadcast %cst_18 : f32 to vector<1x4x1xf32>
      %c0_19 = arith.constant 0 : index
      %c0_20 = arith.constant 0 : index
      %c0_21 = arith.constant 0 : index
      %18 = vector.load %arg5[%c0_19, %c0_20, %c0_21] : memref<1x4x1xf32, #tpu.memory_space<vmem>>, vector<1x4x1xf32>
      tpu.vector_store %arg5[%c0_19, %c0_20, %c0_21], %17 {strides = array<i32>} : memref<1x4x1xf32, #tpu.memory_space<vmem>>, vector<1x4x1xf32>,
      %cst_22 = arith.constant 0xFF800000 : f32
      %19 = vector.broadcast %cst_22 : f32 to vector<1x4x1xf32>
      %c0_23 = arith.constant 0 : index
      %c0_24 = arith.constant 0 : index
      %c0_25 = arith.constant 0 : index
      %20 = vector.load %arg6[%c0_23, %c0_24, %c0_25] : memref<1x4x1xf32, #tpu.memory_space<vmem>>, vector<1x4x1xf32>
      tpu.vector_store %arg6[%c0_23, %c0_24, %c0_25], %19 {strides = array<i32>} : memref<1x4x1xf32, #tpu.memory_space<vmem>>, vector<1x4x1xf32>,
    } else {
    }
    %c0 = arith.constant 0 : index
    %c0_1 = arith.constant 0 : index
    %c0_2 = arith.constant 0 : index
    %3 = vector.load %arg3[%c0, %c0_1, %c0_2] : memref<1x4x256xf32, #tpu.memory_space<vmem>>, vector<1x4x256xf32>
    %c0_3 = arith.constant 0 : index
    %c0_4 = arith.constant 0 : index
    %c0_5 = arith.constant 0 : index
    %4 = vector.load %arg5[%c0_3, %c0_4, %c0_5] : memref<1x4x1xf32, #tpu.memory_space<vmem>>, vector<1x4x1xf32>
    %cst = arith.constant dense<0.000000e+00> : vector<1x4xf32>
    %5 = vector.multi_reduction <add>, %3, %cst [2] : vector<1x4x256xf32> to vector<1x4xf32>
    %6 = vector.shape_cast %5 : vector<1x4xf32> to vector<1x4x1xf32>
    %7 = arith.addf %4, %6 : vector<1x4x1xf32>
    %c0_6 = arith.constant 0 : index
    %c0_7 = arith.constant 0 : index
    %c0_8 = arith.constant 0 : index
    %8 = vector.load %arg5[%c0_6, %c0_7, %c0_8] : memref<1x4x1xf32, #tpu.memory_space<vmem>>, vector<1x4x1xf32>
    tpu.vector_store %arg5[%c0_6, %c0_7, %c0_8], %7 {strides = array<i32>} : memref<1x4x1xf32, #tpu.memory_space<vmem>>, vector<1x4x1xf32>,
    %c0_9 = arith.constant 0 : index
    %c0_10 = arith.constant 0 : index
    %c0_11 = arith.constant 0 : index
    %9 = vector.load %arg6[%c0_9, %c0_10, %c0_11] : memref<1x4x1xf32, #tpu.memory_space<vmem>>, vector<1x4x1xf32>
    %cst_12 = arith.constant dense<0xFF800000> : vector<1x4xf32>
    %10 = vector.multi_reduction <maximumf>, %3, %cst_12 [2] : vector<1x4x256xf32> to vector<1x4xf32>
    %11 = vector.shape_cast %10 : vector<1x4xf32> to vector<1x4x1xf32>
    %12 = arith.maximumf %9, %11 : vector<1x4x1xf32>
    %c0_13 = arith.constant 0 : index
    %c0_14 = arith.constant 0 : index
    %c0_15 = arith.constant 0 : index
    %13 = vector.load %arg6[%c0_13, %c0_14, %c0_15] : memref<1x4x1xf32, #tpu.memory_space<vmem>>, vector<1x4x1xf32>
    tpu.vector_store %arg6[%c0_13, %c0_14, %c0_15], %12 {strides = array<i32>} : memref<1x4x1xf32, #tpu.memory_space<vmem>>, vector<1x4x1xf32>,
    %c0_i32_16 = arith.constant 0 : i32
    %14 = arith.cmpi eq, %arg2, %c0_i32_16 : i32
    %15 = arith.extui %14 : i1 to i32
    %c0_i32_17 = arith.constant 0 : i32
    %16 = arith.cmpi ne, %15, %c0_i32_17 : i32
    scf.if %16 {
      %c0_18 = arith.constant 0 : index
      %c0_19 = arith.constant 0 : index
      %c0_20 = arith.constant 0 : index
      %17 = vector.load %arg5[%c0_18, %c0_19, %c0_20] : memref<1x4x1xf32, #tpu.memory_space<vmem>>, vector<1x4x1xf32>
      %cst_21 = arith.constant 3.906250e-03 : f32
      %18 = vector.broadcast %cst_21 : f32 to vector<1x4x1xf32>
      %19 = arith.mulf %17, %18 : vector<1x4x1xf32>
      %c0_22 = arith.constant 0 : index
      %c0_23 = arith.constant 0 : index
      %c0_24 = arith.constant 0 : index
      %20 = vector.load %arg6[%c0_22, %c0_23, %c0_24] : memref<1x4x1xf32, #tpu.memory_space<vmem>>, vector<1x4x1xf32>
      %21 = arith.addf %19, %20 : vector<1x4x1xf32>
      %cst_25 = arith.constant 5.000000e-01 : f32
      %22 = vector.broadcast %cst_25 : f32 to vector<1x4x1xf32>
      %23 = arith.mulf %22, %21 : vector<1x4x1xf32>
      %c0_26 = arith.constant 0 : index
      %c0_27 = arith.constant 0 : index
      %c0_28 = arith.constant 0 : index
      %24 = vector.load %arg4[%c0_26, %c0_27, %c0_28] : memref<1x4x1xf32, #tpu.memory_space<vmem>>, vector<1x4x1xf32>
      tpu.vector_store %arg4[%c0_26, %c0_27, %c0_28], %23 {strides = array<i32>} : memref<1x4x1xf32, #tpu.memory_space<vmem>>, vector<1x4x1xf32>,
    } else {
    }
    return
  }
  func.func @transform_0(%arg0: i32, %arg1: i32, %arg2: i32) -> (i32, i32, i32) {
    %c0_i32 = arith.constant 0 : i32
    return %arg0, %arg1, %arg2 : i32, i32, i32
  }
  func.func @transform_1(%arg0: i32, %arg1: i32, %arg2: i32) -> (i32, i32, i32) {
    %c0_i32 = arith.constant 0 : i32
    %c0_i32_0 = arith.constant 0 : i32
    return %arg0, %arg1, %c0_i32 : i32, i32, i32
  }
}

</mosaic_0001>

<llo_original>
// kernel: tpu_custom_call.1
$region0: #{tpu_custom_call.1}
  #allocation0 [shape = 'u32[]', space=smem, size = 0x4, offset = 0x4, fixed_abs, tag = 'smem constant byte address 0x4 - core index']
  #allocation1 [shape = 'u32[72,128]{1,0:T(1,128)}', space=vmem, size = 0x9000, scoped, tag = 'internal scratch']
  #allocation2 [shape = 'f32[1,4,1]{2,1,0:T(4,128)}', space=vmem, size = 0x800, scoped, tag = 'scratch operand']
  #allocation3 [shape = 'f32[1,4,1]{2,1,0:T(4,128)}', space=vmem, size = 0x800, scoped, tag = 'scratch operand']
  %s0 = inlined_call_operand.hbm [shape: f32[2,4,256], index: 0, kind: input, shape index: {}]
  %s1 = inlined_call_operand.vmem [shape: f32[2,4,1], index: 1, kind: output, shape index: {}]
  %s2 = sld [smem:[#allocation0]]
  $region49: #{tpu_custom_call.1} parent=0
    _
  %s4 = ssub.s32 1, %s2
  %s5 = scalar_select 0, %s4, %s2
  $region1: #{tpu_custom_call.1} parent=0
    #allocation4 [shape = 'u8[8192]{0}', space=vmem, size = 0x2000, scoped, tag = 'input window, operand 0']
    #allocation5 [shape = 's32[2]{0}', space=sflag, size = 0x8, scoped, tag = 'scoped memory for tpu_custom_call.1']
    %6 = vsyncpa [#allocation5], 0
    %s7 = scalar_lea.sflag [#allocation5], 1
    %8 = vsyncpa %s7, 0
    loop: start=0, step=1, limit=4
    $region2: #{tpu_custom_call.1} parent=1 // loop_pre_header
      _
    $region3: #{tpu_custom_call.1} parent=1 // loop_header
      %s10 = sphi 0, %s14
      %p11 = scmp.ge.s32.totalorder %s10, 4
      %s17 = sphi 0, %s36
      %s18 = sphi 0, %s32
      %s19 = sphi 0, %s28
      %s20 = sphi 0, %s17
      %s21 = sphi 0, %s18
      %s22 = sphi 0, %s19
      %s23 = sphi 0, %s20
      %s24 = sphi 0, %s21
      %s25 = sphi 0, %s22
      %s43 = sphi 0, %s45
      %s46 = sphi 0, %s43
      %s47 = sphi 0, %s46
      %s63 = sphi 0, %s47
      %s71 = sphi 0, %s73
      %s74 = sphi 0, %s71
      %s75 = sphi 0, %s74
      %s91 = sphi 0, %s75
    $region4: #{tpu_custom_call.1} parent=1 // loop_header_branch
      %13 = sbr.rel (%p11) target = $region8
    $region5: #{tpu_custom_call.1} parent=1 // loop_body
      %s15 = ssub.s32 %s10, 1
      %s16 = ssub.s32 %s10, 2
      %s26 = sadd.s32 1, %s19
      %p27 = scmp.ge.s32.totalorder %s26, 1
      %s28 = scalar_select %p27, 0, %s26
      %s29 = sadd.s32 1, %s18
      %s30 = scalar_select %p27, %s29, %s18
      %p31 = scmp.ge.s32.totalorder %s30, 1
      %s32 = scalar_select %p31, 0, %s30
      %s33 = sadd.s32 1, %s17
      %s34 = scalar_select %p31, %s33, %s17
      %p35 = scmp.ge.s32.totalorder %s34, 2
      %s36 = scalar_select %p35, 0, %s34
      %s37 = ssub.s32 %s17, %s36
      %s38 = ssub.s32 %s18, %s32
      %s39 = sor.u32 %s37, %s38
      %s40 = ssub.s32 %s19, %s28
      %s41 = sor.u32 %s39, %s40
      %p42 = scmp.eq.s32.totalorder %s41, 0
      %s44 = sadd.s32 %s43, 1
      %s45 = scalar_select %p42, %s43, %s44
      %p48 = pneg %p42
      %p49 = scmp.eq.s32.totalorder %s10, 1
      %p50 = por %p48, %p49
      %p51 = scmp.ne.s32.totalorder %s43, %s46
      %p52 = scmp.eq.s32.totalorder %s10, 0
      %p53 = por %p51, %p52
      %p54 = scmp.ne.s32.totalorder %s43, %s46
      %p55 = scmp.eq.s32.totalorder %s15, 1
      %p56 = por %p54, %p55
      %p57 = scmp.ne.s32.totalorder %s46, %s47
      %p58 = scmp.eq.s32.totalorder %s15, 0
      %p59 = por %p57, %p58
      %p60 = scmp.ne.s32.totalorder %s46, %s47
      %p61 = scmp.eq.s32.totalorder %s16, 1
      %p62 = por %p60, %p61
      %p64 = scmp.ne.s32.totalorder %s47, %s63
      %p65 = scmp.eq.s32.totalorder %s16, 0
      %p66 = por %p64, %p65
      %s67 = ssub.s32 %s17, %s36
      %s68 = ssub.s32 %s18, %s32
      %s69 = sor.u32 %s67, %s68
      %p70 = scmp.eq.s32.totalorder %s69, 0
      %s72 = sadd.s32 %s71, 1
      %s73 = scalar_select %p70, %s71, %s72
      %p76 = pneg %p70
      %p77 = scmp.eq.s32.totalorder %s10, 1
      %p78 = por %p76, %p77
      %p79 = scmp.ne.s32.totalorder %s71, %s74
      %p80 = scmp.eq.s32.totalorder %s10, 0
      %p81 = por %p79, %p80
      %p82 = scmp.ne.s32.totalorder %s71, %s74
      %p83 = scmp.eq.s32.totalorder %s15, 1
      %p84 = por %p82, %p83
      %p85 = scmp.ne.s32.totalorder %s74, %s75
      %p86 = scmp.eq.s32.totalorder %s15, 0
      %p87 = por %p85, %p86
      %p88 = scmp.ne.s32.totalorder %s74, %s75
      %p89 = scmp.eq.s32.totalorder %s16, 1
      %p90 = por %p88, %p89
      %p92 = scmp.ne.s32.totalorder %s75, %s91
      %p93 = scmp.eq.s32.totalorder %s16, 0
      %p94 = por %p92, %p93
      %p95 = scmp.le.s32.totalorder 1, %s10
      %p96 = scmp.lt.s32.totalorder %s10, 3
      %p97 = pnand %p95, %p96
      %p98 = pneg %p97
      // Predicated region
      $region9: #{tpu_custom_call.1} parent=5 // pred_check
        _
      $region10: #{tpu_custom_call.1} parent=5 // pred_check_branch
        %100 = sbr.rel (%p97) target = $region12
      $region11: #{tpu_custom_call.1} parent=5 // pred_region
        %s101 = ssub.s32 %s10, 1
      $region12: #{tpu_custom_call.1} parent=5 // pred_fallthru
        _
      %p102 = scmp.lt.s32.totalorder %s10, 2
      // Predicated region
      $region13: #{tpu_custom_call.1} parent=5 // pred_check
        %p103 = pneg %p102
      $region14: #{tpu_custom_call.1} parent=5 // pred_check_branch
        %105 = sbr.rel (%p103) target = $region16
      $region15: #{tpu_custom_call.1} parent=5 // pred_region
        // Predicated region
        $region17: #{tpu_custom_call.1} parent=15 // pred_check
          %p106 = pneg %p53
        $region18: #{tpu_custom_call.1} parent=15 // pred_check_branch
          %108 = sbr.rel (%p106) target = $region20
        $region19: #{tpu_custom_call.1} parent=15 // pred_region
          %s109 = sand.u32 %s43, 1
          %s110 = scalar_lea.sflag [#allocation5], %s109
          %s111 = sand.u32 %s43, 1
          %s112 = smul.addr %s111, 8
          %s113 = scalar_lea.vmem [#allocation4], %s112
          %s114 = smul.u32 2, %s19
          %116 = vsyncadd %s110, 0
          %s117 = smul.addr %s18, 2
          %s118 = sadd.s32 %s114, %s117
          %s119 = smul.addr %s17, 2
          %s120 = sadd.s32 %s118, %s119
          %s121 = smul.addr %s120, 4
          %s122 = scalar_lea.hbm %s0, %s121
          %s124 = sshll.u32 %s122, 4
          %s125 = int_to_ptr.hbm [resolvable:$true] %s124
          %s126 = sshll.u32 %s113, 4
          %s127 = int_to_ptr.vmem [resolvable:$true] %s126
          %129 = dma.hbm_to_vmem [thread:$0]  %s125, 128, %s127, %s110
        $region20: #{tpu_custom_call.1} parent=15 // pred_fallthru
          _
      $region16: #{tpu_custom_call.1} parent=5 // pred_fallthru
        _
      %p130 = scmp.le.s32.totalorder 1, %s10
      %p131 = scmp.lt.s32.totalorder %s10, 3
      %p132 = pnand %p130, %p131
      %p133 = pneg %p132
      // Predicated region
      $region21: #{tpu_custom_call.1} parent=5 // pred_check
        _
      $region22: #{tpu_custom_call.1} parent=5 // pred_check_branch
        %135 = sbr.rel (%p132) target = $region24
      $region23: #{tpu_custom_call.1} parent=5 // pred_region
        %s136 = ssub.s32 %s10, 1
        %s137 = sand.u32 %s46, 1
        %s138 = scalar_lea.sflag [#allocation5], %s137
        %s139 = sand.u32 %s46, 1
        %s140 = smul.addr %s139, 8
        %s141 = scalar_lea.vmem [#allocation4], %s140
        // Predicated region
        $region25: #{tpu_custom_call.1} parent=23 // pred_check
          %p142 = pneg %p59
        $region26: #{tpu_custom_call.1} parent=23 // pred_check_branch
          %144 = sbr.rel (%p142) target = $region28
        $region27: #{tpu_custom_call.1} parent=23 // pred_region
          %146 = dma.done %s138, 128
        $region28: #{tpu_custom_call.1} parent=23 // pred_fallthru
          _
        %s147 = sand.u32 %s46, 1
        %s148 = scalar_lea.sflag [#allocation5], %s147
        %s149 = sand.u32 %s46, 1
        %s150 = smul.addr %s149, 8
        %s151 = scalar_lea.vmem [#allocation4], %s150
        %p152 = pneg %p59
        %p153 = pneg %p56
        %p154 = pneg %p87
        %p155 = pneg %p84
        %p156 = scmp.lt.s32.totalorder %s20, 1
        %s157 = scalar_select %p156, %s20, 1
        %p158 = scmp.lt.s32.totalorder %s21, 0
        %s159 = scalar_select %p158, %s21, 0
        %s160 = sadd.s32 %s159, %s157
        %s161 = smul.addr %s160, 4
        %s162 = scalar_lea.vmem %s1, %s161
        %s163 = smul.u32 2, %s22
        %p164 = scmp.lt.s32.totalorder %s20, 1
        %s165 = scalar_select %p164, %s20, 1
        %p166 = scmp.lt.s32.totalorder %s21, 0
        %s167 = scalar_select %p166, %s21, 0
        %s168 = sadd.s32 %s167, %s165
        %s169 = smul.addr %s168, 4
        %s170 = scalar_lea.vmem %s1, %s169
        %p171 = scmp.eq.s32.totalorder %s22, 0
        // Predicated region
        $region29: #{tpu_custom_call.1} parent=23 // pred_check
          %p172 = pneg %p171
        $region30: #{tpu_custom_call.1} parent=23 // pred_check_branch
          %174 = sbr.rel (%p172) target = $region32
        $region31: #{tpu_custom_call.1} parent=23 // pred_region
          %vm175 = vcmask 3072
          %176 = vst.msk [vmem:[#allocation2] sm:$0xf] %vm175, 0.0
          %177 = vst.msk [vmem:[#allocation3] sm:$0xf] %vm175, -inf
        $region32: #{tpu_custom_call.1} parent=23 // pred_fallthru
          _
        %v178 = vld [vmem:[%s141] sm:$0xff]
        %v179 = vld [vmem:[#allocation2] sm:$0xf]
        %181 = vst [vmem:[#allocation1] ss:$2 sm:$0xff] %v178
        %v182 = vld.sshfl [vmem:[#allocation1] sm:$0xff pattern:$0x75316420]
        %v183 = vld.sshfl [vmem:[#allocation1 + $0x8] sm:$0xff pattern:$0x75316420]
        %vm186 = vcmask 1043456
        %v187 = vsel %vm186, %v182, 0.0
        %v188 = vsel %vm186, %v183, 0.0
        %v189 = vadd.f32 %v187, %v188
        %190 = vadd.xlane.f32.xlu0 %v189
        %v191 = vpop.xlane.xlu0 %190
        %v192 = vadd.f32 %v179, %v191
        %vm193 = vcmask 3072
        %194 = vst.msk [vmem:[#allocation2] sm:$0xf] %vm193, %v192
        %v195 = vld [vmem:[#allocation3] sm:$0xf]
        %196 = vst [vmem:[#allocation1] ss:$2 sm:$0xff] %v178
        %v197 = vld.sshfl [vmem:[#allocation1] sm:$0xff pattern:$0x75316420]
        %v198 = vld.sshfl [vmem:[#allocation1 + $0x8] sm:$0xff pattern:$0x75316420]
        %v201 = vsel %vm186, %v197, -inf
        %v202 = vsel %vm186, %v198, -inf
        %v203 = vmax.f32 %v201, %v202
        %204 = vmax.xlane.f32.xlu0 %v203
        %v205 = vpop.xlane.xlu0 %204
        %v206 = vmax.f32 %v195, %v205
        %207 = vst.msk [vmem:[#allocation3] sm:$0xf] %vm193, %v206
        // Predicated region
        $region33: #{tpu_custom_call.1} parent=23 // pred_check
          %p208 = pneg %p171
        $region34: #{tpu_custom_call.1} parent=23 // pred_check_branch
          %210 = sbr.rel (%p208) target = $region36
        $region35: #{tpu_custom_call.1} parent=23 // pred_region
          %v211 = vld [vmem:[#allocation2] sm:$0xf]
          %v212 = vmul.f32 %v211, 0.00390625
          %v213 = vld [vmem:[#allocation3] sm:$0xf]
          %v214 = vadd.f32 %v212, %v213
          %v215 = vmul.f32 %v214, 0.5
          %216 = vst.msk [vmem:[%s170] sm:$0xf] %vm193, %v215
        $region36: #{tpu_custom_call.1} parent=23 // pred_fallthru
          _
        %p217 = scmp.lt.s32.totalorder %s20, 1
        %s218 = scalar_select %p217, %s20, 1
        %p219 = scmp.lt.s32.totalorder %s21, 0
        %s220 = scalar_select %p219, %s21, 0
        %s221 = sadd.s32 %s220, %s218
        %s222 = smul.addr %s221, 4
        %s223 = scalar_lea.vmem %s1, %s222
        // Predicated region
        $region37: #{tpu_custom_call.1} parent=23 // pred_check
          %p224 = pneg %p84
        $region38: #{tpu_custom_call.1} parent=23 // pred_check_branch
          %226 = sbr.rel (%p224) target = $region40
        $region39: #{tpu_custom_call.1} parent=23 // pred_region
          _
        $region40: #{tpu_custom_call.1} parent=23 // pred_fallthru
          _
      $region24: #{tpu_custom_call.1} parent=5 // pred_fallthru
        _
      %p227 = scmp.le.s32.totalorder 2, %s10
      // Predicated region
      $region41: #{tpu_custom_call.1} parent=5 // pred_check
        %p228 = pneg %p227
      $region42: #{tpu_custom_call.1} parent=5 // pred_check_branch
        %230 = sbr.rel (%p228) target = $region44
      $region43: #{tpu_custom_call.1} parent=5 // pred_region
        %s231 = ssub.s32 %s10, 2
        // Predicated region
        $region45: #{tpu_custom_call.1} parent=43 // pred_check
          %p232 = pneg %p90
        $region46: #{tpu_custom_call.1} parent=43 // pred_check_branch
          %234 = sbr.rel (%p232) target = $region48
        $region47: #{tpu_custom_call.1} parent=43 // pred_region
          %p235 = scmp.lt.s32.totalorder %s23, 1
          %s236 = scalar_select %p235, %s23, 1
          %p237 = scmp.lt.s32.totalorder %s24, 0
          %s238 = scalar_select %p237, %s24, 0
          %s239 = sadd.s32 %s238, %s236
          %s240 = smul.addr %s239, 4
          %s241 = scalar_lea.vmem %s1, %s240
        $region48: #{tpu_custom_call.1} parent=43 // pred_fallthru
          _
      $region44: #{tpu_custom_call.1} parent=5 // pred_fallthru
        _
    $region6: #{tpu_custom_call.1} parent=1 // loop_footer
      %s14 = sadd.s32 1, %s10
    $region7: #{tpu_custom_call.1} parent=1 // loop_footer_branch
      %9 = sbr.rel target = $region3
    $region8: #{tpu_custom_call.1} parent=1 // loop_exit
      _
    %242 = vsyncpa [#allocation5], 1
    %s243 = scalar_lea.sflag [#allocation5], 1
    %244 = vsyncpa %s243, 1

</llo_original>
